<compile_context>
chip_gen: v5e
topology: v5e:2x2
jax: 0.10.0
libtpu: 0.0.40
codegen_flags: <defaults>
</compile_context>

<pallas_src>
import jax
import jax.numpy as jnp
from jax.experimental import pallas as pl
from jax.experimental.pallas import tpu as pltpu

_LANE_CHOICES = (512, 256, 128)          # lane-dense last dim, multiple of 128
_TARGET_BLOCK_BYTES = 2 * 1024 * 1024    # ~2 MiB/block; 2 arrays x 2 bufs = 8 MiB
_MIN_GRID_STEPS = 8                      # keep both v7x TensorCores busy


def _uniform_from_bits(bits):
    """uint32 random bits -> float32 uniform in [0, 1)."""
    u = pltpu.bitcast(bits, jnp.uint32)
    u = jax.lax.shift_right_logical(u, jnp.uint32(8))  # keep 24 bits
    return u.astype(jnp.float32) * jnp.float32(1.0 / (1 << 24))


def _train_kernel_prng(seed_ref, x_ref, o_ref):
    """Training path, on-chip PRNG (TPU). hard = (u < sigmoid(x))."""
    pltpu.prng_seed(seed_ref[0], pl.program_id(0))  # distinct stream per tile
    p = jax.nn.sigmoid(x_ref[...].astype(jnp.float32))
    u = _uniform_from_bits(pltpu.prng_random_bits(p.shape))
    o_ref[...] = (u < p).astype(o_ref.dtype)


def _train_kernel_uniform(x_ref, u_ref, o_ref):
    """Training path with externally supplied uniforms (portable fallback)."""
    p = jax.nn.sigmoid(x_ref[...].astype(jnp.float32))
    o_ref[...] = (u_ref[...] < p).astype(o_ref.dtype)


def _eval_kernel(x_ref, o_ref):
    """Eval path: (sigmoid(x) > 0).float() == (x > -inf).float() exactly."""
    o_ref[...] = (x_ref[...] > -jnp.inf).astype(o_ref.dtype)


def _pick_layout(total):
    """Choose a lane width that divides `total` so no padding pass is needed."""
    for lane in _LANE_CHOICES:
        if total % lane == 0:
            return lane, False
    return _LANE_CHOICES[0], True


def _row_align(*dtypes):
    """Sublane alignment for the second-minor dim (8 f32 / 16 bf16 / 32 i8)."""
    itemsize = min(jnp.dtype(d).itemsize for d in dtypes)
    return max(8, 32 // itemsize)


def _pick_tile_rows(rows, lane, align):
    """Balanced tile rows: ~2 MiB blocks, ragged last block, >= ~8 grid steps."""
    max_rows = max(align, (_TARGET_BLOCK_BYTES // (lane * 4)) // align * align)
    if rows <= align:
        return rows  # single full-dim block (allowed even if < 8 rows)
    n_steps = max(pl.cdiv(rows, max_rows),
                  min(_MIN_GRID_STEPS, pl.cdiv(rows, align)))
    tile_r = pl.cdiv(pl.cdiv(rows, n_steps), align) * align
    return min(tile_r, max_rows)


def diff_gumbel_binarize(x, seed=0, temperature=1.0, training=True):
    """Pallas implementation of diffGumbelBinarize.forward.

    `temperature` is accepted for API parity; for any positive temperature the
    hard forward output is independent of it (it only affects the soft value
    used by the STE backward, which this forward kernel does not compute).
    """
    del temperature  # no effect on the hard forward sample for T > 0
    orig_shape = x.shape
    total = x.size
    in_dtype = x.dtype if jnp.issubdtype(x.dtype, jnp.floating) else jnp.float32
    if x.dtype != in_dtype:
        x = x.astype(in_dtype)
    out_dtype = in_dtype if training else jnp.float32  # eval matches .float()

    lane, needs_pad = _pick_layout(total)
    flat = x.reshape(-1)
    if needs_pad:
        rows = pl.cdiv(total, lane)
        flat = jnp.pad(flat, (0, rows * lane - total))
    else:
        rows = total // lane
    x2 = flat.reshape(rows, lane)

    align = _row_align(in_dtype, out_dtype)
    tile_r = _pick_tile_rows(rows, lane, align)
    grid = (pl.cdiv(rows, tile_r),)
    out_shape = jax.ShapeDtypeStruct((rows, lane), out_dtype)
    block = pl.BlockSpec((tile_r, lane), lambda i: (i, 0))

    n_elem = rows * lane
    io_bytes = n_elem * (jnp.dtype(in_dtype).itemsize
                         + jnp.dtype(out_dtype).itemsize)
    on_tpu = jax.default_backend() == "tpu"
    cparams = (pltpu.CompilerParams(dimension_semantics=("parallel",))
               if on_tpu else None)

    if training:
        if on_tpu:
            seed_arr = jnp.asarray([seed], dtype=jnp.int32)
            grid_spec = pltpu.PrefetchScalarGridSpec(
                num_scalar_prefetch=1,
                grid=grid,
                in_specs=[pl.BlockSpec((tile_r, lane), lambda i, s: (i, 0))],
                out_specs=pl.BlockSpec((tile_r, lane), lambda i, s: (i, 0)),
            )
            out2 = pl.pallas_call(
                _train_kernel_prng,
                out_shape=out_shape,
                grid_spec=grid_spec,
                compiler_params=cparams,
                cost_estimate=pl.CostEstimate(
                    flops=6 * n_elem,
                    transcendentals=n_elem,
                    bytes_accessed=io_bytes,
                ),
            )(seed_arr, x2)
        else:
            # Portable fallback: on-chip PRNG primitives only lower on TPU.
            u = jax.random.uniform(jax.random.PRNGKey(seed), (rows, lane),
                                   dtype=jnp.float32)
            out2 = pl.pallas_call(
                _train_kernel_uniform,
                out_shape=out_shape,
                grid=grid,
                in_specs=[block, block],
                out_specs=block,
                cost_estimate=pl.CostEstimate(
                    flops=4 * n_elem,
                    transcendentals=n_elem,
                    bytes_accessed=io_bytes + 4 * n_elem,
                ),
            )(x2, u)
    else:
        out2 = pl.pallas_call(
            _eval_kernel,
            out_shape=out_shape,
            grid=grid,
            in_specs=[block],
            out_specs=block,
            compiler_params=cparams,
            cost_estimate=pl.CostEstimate(
                flops=n_elem, transcendentals=0, bytes_accessed=io_bytes),
        )(x2)

    if needs_pad:
        return out2.reshape(-1)[:total].reshape(orig_shape)
    return out2.reshape(orig_shape)


# TODO(synk): the STE backward (grad * soft * (1 - soft)) is autograd-only in
# the reference module and is not implemented here (forward pass only).


if __name__ == "__main__":
    key = jax.random.PRNGKey(0)
    x = jax.random.normal(key, (2, 4, 16, 16), dtype=jnp.float32)

    # training mode: Gumbel-sigmoid STE forward -> hard 0/1 samples
    y_train = diff_gumbel_binarize(x, seed=0, temperature=1.0, training=True)
    y_train = jax.block_until_ready(y_train)

    # eval mode: (sigmoid(x) > 0).float() -> all ones for finite inputs
    y_eval = diff_gumbel_binarize(x, training=False)
    y_eval = jax.block_until_ready(y_eval)

    assert y_train.shape == x.shape and y_train.dtype == x.dtype
    assert bool(jnp.all((y_train == 0.0) | (y_train == 1.0)))
    assert y_eval.shape == x.shape and y_eval.dtype == jnp.float32
    assert bool(jnp.all(y_eval == 1.0))

    # bf16 input with a non-128-divisible size (exercises pad + ragged block)
    xb = jax.random.normal(jax.random.PRNGKey(1), (3, 5, 7, 9),
                           dtype=jnp.bfloat16)
    yb = jax.block_until_ready(diff_gumbel_binarize(xb, seed=3, training=True))
    assert yb.shape == xb.shape and yb.dtype == xb.dtype
    assert bool(jnp.all((yb == 0) | (yb == 1)))

    print("KERNEL_OK")
</pallas_src>

<mosaic_0001>
module attributes {stable_mosaic.version = 11 : i64} {
  func.func @_train_kernel_uniform(%arg0: i32, %arg1: memref<4x512xf32, #tpu.memory_space<vmem>>, %arg2: memref<4x512xf32, #tpu.memory_space<vmem>>, %arg3: memref<4x512xf32, #tpu.memory_space<vmem>>) attributes {dimension_semantics = [#tpu.dimension_semantics<arbitrary>], iteration_bounds = array<i64: 1>, scalar_prefetch = 0 : i64, scratch_operands = 0 : i64, tpu.core_type = #tpu.core_type<tc>, window_params = [{transform_indices = @transform_0, window_bounds = array<i64: 4, 512>}, {transform_indices = @transform_1, window_bounds = array<i64: 4, 512>}, {transform_indices = @transform_2, window_bounds = array<i64: 4, 512>}]} {
    %c0 = arith.constant 0 : index
    %c0_0 = arith.constant 0 : index
    %0 = vector.load %arg1[%c0, %c0_0] : memref<4x512xf32, #tpu.memory_space<vmem>>, vector<4x512xf32>
    %1 = arith.negf %0 : vector<4x512xf32>
    %2 = math.exp %1 : vector<4x512xf32>
    %cst = arith.constant 1.000000e+00 : f32
    %3 = vector.broadcast %cst : f32 to vector<4x512xf32>
    %4 = arith.addf %3, %2 : vector<4x512xf32>
    %5 = arith.divf %3, %4 : vector<4x512xf32>
    %c0_1 = arith.constant 0 : index
    %c0_2 = arith.constant 0 : index
    %6 = vector.load %arg2[%c0_1, %c0_2] : memref<4x512xf32, #tpu.memory_space<vmem>>, vector<4x512xf32>
    %7 = arith.cmpf olt, %6, %5 : vector<4x512xf32>
    %8 = arith.extui %7 : vector<4x512xi1> to vector<4x512xi32>
    %9 = arith.sitofp %8 : vector<4x512xi32> to vector<4x512xf32>
    %c0_3 = arith.constant 0 : index
    %c0_4 = arith.constant 0 : index
    %10 = vector.load %arg3[%c0_3, %c0_4] : memref<4x512xf32, #tpu.memory_space<vmem>>, vector<4x512xf32>
    tpu.vector_store %arg3[%c0_3, %c0_4], %9 {strides = array<i32>} : memref<4x512xf32, #tpu.memory_space<vmem>>, vector<4x512xf32>,
    return
  }
  func.func @transform_0(%arg0: i32) -> (i32, i32) {
    %c0_i32 = arith.constant 0 : i32
    %c0_i32_0 = arith.constant 0 : i32
    return %arg0, %c0_i32 : i32, i32
  }
  func.func @transform_1(%arg0: i32) -> (i32, i32) {
    %c0_i32 = arith.constant 0 : i32
    %c0_i32_0 = arith.constant 0 : i32
    return %arg0, %c0_i32 : i32, i32
  }
  func.func @transform_2(%arg0: i32) -> (i32, i32) {
    %c0_i32 = arith.constant 0 : i32
    %c0_i32_0 = arith.constant 0 : i32
    return %arg0, %c0_i32 : i32, i32
  }
}

</mosaic_0001>

<llo_original>
// kernel: tpu_custom_call.1
$region0: #{tpu_custom_call.1}
  #allocation0 [shape = 'u32[]', space=smem, size = 0x4, offset = 0x4, fixed_abs, tag = 'smem constant byte address 0x4 - core index']
  #allocation1 [shape = 'u32[72,128]{1,0:T(1,128)}', space=vmem, size = 0x9000, scoped, tag = 'internal scratch']
  %s0 = inlined_call_operand.hbm [shape: f32[4,512], index: 0, kind: input, shape index: {}]
  %s1 = inlined_call_operand.hbm [shape: f32[4,512], index: 1, kind: input, shape index: {}]
  %s2 = inlined_call_operand.hbm [shape: f32[4,512], index: 2, kind: output, shape index: {}]
  %s3 = sld [smem:[#allocation0]]
  $region26: #{tpu_custom_call.1} parent=0
    _
  %s5 = ssub.s32 1, %s3
  %s6 = scalar_select 0, %s5, %s3
  $region1: #{tpu_custom_call.1} parent=0
    #allocation2 [shape = 'u8[8192]{0}', space=vmem, size = 0x2000, scoped, tag = 'input window, operand 0, single buffered']
    #allocation3 [shape = 's32[1]{0}', space=sflag, size = 0x4, scoped, tag = 'scoped memory for tpu_custom_call.1']
    #allocation4 [shape = 's32[1]{0}', space=sflag, size = 0x4, scoped, tag = 'scoped memory for tpu_custom_call.1']
    #allocation5 [shape = 'u8[8192]{0}', space=vmem, size = 0x2000, scoped, tag = 'input window, operand 1, single buffered']
    #allocation6 [shape = 's32[1]{0}', space=sflag, size = 0x4, scoped, tag = 'scoped memory for tpu_custom_call.1']
    #allocation7 [shape = 'u8[8192]{0}', space=vmem, size = 0x2000, scoped, tag = 'output window, operand 0, single buffered']
    %7 = vsyncpa [#allocation3], 0
    %8 = vsyncpa [#allocation6], 0
    %9 = vsyncpa [#allocation4], 0
    // Predicated region
    $region2: #{tpu_custom_call.1} parent=1 // pred_check
      _
    $region3: #{tpu_custom_call.1} parent=1 // pred_check_branch
      %11 = sbr.rel (0) target = $region5
    $region4: #{tpu_custom_call.1} parent=1 // pred_region
      %13 = vsyncadd [#allocation3], 0
      %s15 = sshll.u32 %s0, 4
      %s16 = int_to_ptr.hbm [resolvable:$true] %s15
      %s17 = sshll.u32 [#allocation2], 4
      %s18 = int_to_ptr.vmem [resolvable:$true] %s17
      %20 = dma.hbm_to_vmem [thread:$0]  %s16, 256, %s18, [#allocation3]
    $region5: #{tpu_custom_call.1} parent=1 // pred_fallthru
      _
    // Predicated region
    $region6: #{tpu_custom_call.1} parent=1 // pred_check
      _
    $region7: #{tpu_custom_call.1} parent=1 // pred_check_branch
      %22 = sbr.rel (0) target = $region9
    $region8: #{tpu_custom_call.1} parent=1 // pred_region
      %24 = vsyncadd [#allocation6], 0
      %s26 = sshll.u32 %s1, 4
      %s27 = int_to_ptr.hbm [resolvable:$true] %s26
      %s28 = sshll.u32 [#allocation5], 4
      %s29 = int_to_ptr.vmem [resolvable:$true] %s28
      %31 = dma.hbm_to_vmem [thread:$0]  %s27, 256, %s29, [#allocation6]
    $region9: #{tpu_custom_call.1} parent=1 // pred_fallthru
      _
    // Predicated region
    $region10: #{tpu_custom_call.1} parent=1 // pred_check
      _
    $region11: #{tpu_custom_call.1} parent=1 // pred_check_branch
      %33 = sbr.rel (0) target = $region13
    $region12: #{tpu_custom_call.1} parent=1 // pred_region
      %35 = dma.done [#allocation3], 256
    $region13: #{tpu_custom_call.1} parent=1 // pred_fallthru
      _
    // Predicated region
    $region14: #{tpu_custom_call.1} parent=1 // pred_check
      _
    $region15: #{tpu_custom_call.1} parent=1 // pred_check_branch
      %37 = sbr.rel (0) target = $region17
    $region16: #{tpu_custom_call.1} parent=1 // pred_region
      %39 = dma.done [#allocation6], 256
    $region17: #{tpu_custom_call.1} parent=1 // pred_fallthru
      _
    %v40 = vld [vmem:[#allocation2] sm:$0xff]
    %v41 = vld [vmem:[#allocation2 + $0x8] sm:$0xff]
    %v42 = vxor.u32 %v40, 2147483648
    %v43 = vxor.u32 %v41, 2147483648
    %v44 = vmul.f32 %v42, 1.442695
    %v45 = vpow.pop %v44
    %v46 = vmul.f32 %v43, 1.442695
    %v47 = vpow.pop %v46
    %v48 = vadd.f32 %v45, 1.0
    %v49 = vadd.f32 %v47, 1.0
    %v50 = vrcp.pop %v48
    %v51 = vmul.f32 %v48, %v50
    %v52 = vsub.f32 1.0, %v51
    %v53 = vmul.f32 %v50, %v52
    %v54 = vadd.f32 %v50, %v53
    %vm55 = vweird.f32 %v48
    %vm56 = vweird.f32 %v50
    %vm57 = vmor %vm55, %vm56
    %v58 = vsel %vm57, %v50, %v54
    %v59 = vand.u32 2147483647, %v48
    %vm60 = vcmp.eq.f32.partialorder %v59, 8.507059e+37
    %v61 = vand.u32 %v48, 2147483648
    %v62 = vor.u32 1.1754944e-38, %v61
    %v63 = vsel %vm60, %v62, %v58
    %v64 = vmul.f32 1.0, %v63
    %v65 = vrcp.pop %v49
    %v66 = vmul.f32 %v49, %v65
    %v67 = vsub.f32 1.0, %v66
    %v68 = vmul.f32 %v65, %v67
    %v69 = vadd.f32 %v65, %v68
    %vm70 = vweird.f32 %v49
    %vm71 = vweird.f32 %v65
    %vm72 = vmor %vm70, %vm71
    %v73 = vsel %vm72, %v65, %v69
    %v74 = vand.u32 2147483647, %v49
    %vm75 = vcmp.eq.f32.partialorder %v74, 8.507059e+37
    %v76 = vand.u32 %v49, 2147483648
    %v77 = vor.u32 1.1754944e-38, %v76
    %v78 = vsel %vm75, %v77, %v73
    %v79 = vmul.f32 1.0, %v78
    %v80 = vld [vmem:[#allocation5] sm:$0xff]
    %v81 = vld [vmem:[#allocation5 + $0x8] sm:$0xff]
    %vm82 = vcmp.lt.f32.partialorder %v80, %v64
    %vm83 = vcmp.lt.f32.partialorder %v81, %v79
    %v84 = vsel %vm82, 1, 0
    %v85 = vsel %vm83, 1, 0
    %v86 = vcvt.s32.f32 %v84
    %v87 = vcvt.s32.f32 %v85
    %88 = vst [vmem:[#allocation7] sm:$0xff] %v86
    %89 = vst [vmem:[#allocation7 + $0x8] sm:$0xff] %v87
    // Predicated region
    $region18: #{tpu_custom_call.1} parent=1 // pred_check
      _
    $region19: #{tpu_custom_call.1} parent=1 // pred_check_branch
      %91 = sbr.rel (0) target = $region21
    $region20: #{tpu_custom_call.1} parent=1 // pred_region
      %93 = vsyncadd [#allocation4], 0
      %s95 = sshll.u32 [#allocation7], 4
      %s96 = int_to_ptr.vmem [resolvable:$true] %s95
      %s97 = sshll.u32 %s2, 4
      %s98 = int_to_ptr.hbm [resolvable:$true] %s97
      %100 = dma.vmem_to_hbm [thread:$0]  %s96, 256, %s98, [#allocation4]
    $region21: #{tpu_custom_call.1} parent=1 // pred_fallthru
      _
    // Predicated region
    $region22: #{tpu_custom_call.1} parent=1 // pred_check
      _
    $region23: #{tpu_custom_call.1} parent=1 // pred_check_branch
      %102 = sbr.rel (0) target = $region25
    $region24: #{tpu_custom_call.1} parent=1 // pred_region
      %104 = dma.done [#allocation4], 256
    $region25: #{tpu_custom_call.1} parent=1 // pred_fallthru
      _
    %105 = vsyncpa [#allocation3], 1
    %106 = vsyncpa [#allocation6], 1
    %107 = vsyncpa [#allocation4], 1

</llo_original>
